<compile_context>
chip_gen: v6e
topology: v6e:2x2x1
jax: 0.10.0
libtpu: 0.0.40
codegen_flags: <defaults>
</compile_context>

<pallas_src>
import functools
import math

import jax
import jax.numpy as jnp
from jax.experimental import pallas as pl
from jax.experimental.pallas import tpu as pltpu

_OUT_PAD = 8  # minimum legal lane width for the padded (300 -> 1) output


def _round_up(n, m):
    return ((n + m - 1) // m) * m


# ---------------------------------------------------------------------------
# Kernels: whole 3-layer MLP per batch tile.
#   x / u tiles : (TB, D) f32, true feature widths, streamed over the grid.
#   W1, W2      : bf16, constant index_map -> resident in VMEM across steps.
#   W3, biases  : f32 (tiny).
#   output      : (TB, 8) f32, only column 0 is real.
# ---------------------------------------------------------------------------
def beta_nn_kernel_x(x_ref, w1_ref, b1_ref, w2_ref, b2_ref, w3_ref, b3_ref,
                     o_ref):
    x = x_ref[...].astype(jnp.bfloat16)

    h1 = jnp.dot(x, w1_ref[...], preferred_element_type=jnp.float32) + b1_ref[...]
    h1 = jnp.maximum(h1, 0.0)

    h2 = jnp.dot(h1.astype(jnp.bfloat16), w2_ref[...],
                 preferred_element_type=jnp.float32) + b2_ref[...]
    h2 = jnp.maximum(h2, 0.0)

    # Layer 3 is tiny (384x8): keep it f32 and use the exact sigmoid so the
    # output is a clean probability in [0, 1].
    z = jnp.dot(h2, w3_ref[...], preferred_element_type=jnp.float32) + b3_ref[...]
    o_ref[...] = 1.0 / (1.0 + jnp.exp(-z))


def beta_nn_kernel_xu(x_ref, u_ref, w1x_ref, w1u_ref, b1_ref, w2_ref, b2_ref,
                      w3_ref, b3_ref, o_ref):
    x = x_ref[...].astype(jnp.bfloat16)
    u = u_ref[...].astype(jnp.bfloat16)

    # cat([x, u]) @ W1  ==  x @ W1[:state_dim] + u @ W1[state_dim:]
    h1 = (jnp.dot(x, w1x_ref[...], preferred_element_type=jnp.float32)
          + jnp.dot(u, w1u_ref[...], preferred_element_type=jnp.float32)
          + b1_ref[...])
    h1 = jnp.maximum(h1, 0.0)

    h2 = jnp.dot(h1.astype(jnp.bfloat16), w2_ref[...],
                 preferred_element_type=jnp.float32) + b2_ref[...]
    h2 = jnp.maximum(h2, 0.0)

    z = jnp.dot(h2, w3_ref[...], preferred_element_type=jnp.float32) + b3_ref[...]
    o_ref[...] = 1.0 / (1.0 + jnp.exp(-z))


# ---------------------------------------------------------------------------
# One-time host-side parameter prep (outside the per-call jit).
# ---------------------------------------------------------------------------
def pad_beta_nn_params(params, state_dim, condition_on_action=False):
    """Zero-pad hidden widths to 128-aligned shapes, split W1 into its
    state/action halves, cast the big weights to bf16 (zero padding is
    mathematically inert)."""
    w1, b1, w2, b2, w3, b3 = params
    H1, H2 = w1.shape[1], w2.shape[1]
    H1P, H2P = _round_up(H1, 128), _round_up(H2, 128)

    def pad_w(w, rows, cols, dtype):
        return (jnp.zeros((rows, cols), dtype)
                .at[: w.shape[0], : w.shape[1]].set(w.astype(dtype)))

    def pad_b(b, cols):
        return (jnp.zeros((1, cols), jnp.float32)
                .at[0, : b.shape[0]].set(b.astype(jnp.float32)))

    b1_p = pad_b(b1, H1P)
    w2_p = pad_w(w2, H1P, H2P, jnp.bfloat16)
    b2_p = pad_b(b2, H2P)
    w3_p = pad_w(w3, H2P, _OUT_PAD, jnp.float32)   # tiny: keep f32
    b3_p = pad_b(b3, _OUT_PAD)

    if condition_on_action:
        w1x = pad_w(w1[:state_dim], state_dim, H1P, jnp.bfloat16)
        w1u = pad_w(w1[state_dim:], w1.shape[0] - state_dim, H1P, jnp.bfloat16)
        return (w1x, w1u, b1_p, w2_p, b2_p, w3_p, b3_p)
    w1x = pad_w(w1, w1.shape[0], H1P, jnp.bfloat16)
    return (w1x, b1_p, w2_p, b2_p, w3_p, b3_p)


def _batch_tiling(B):
    """Pick (TB, num_tiles).  Tiny batches -> single tile (grid overhead
    dominates).  Larger batches -> an EVEN tile count >= 2 so v7x's two
    TensorCores split the 'parallel' axis, with TB capped at 1024 rows."""
    BP16 = _round_up(max(B, 1), 16)
    if BP16 <= 256:
        return BP16, 1
    num_tiles = 2 * max(1, -(-BP16 // 2048))       # smallest even count, TB <= 1024
    TB = _round_up(-(-BP16 // num_tiles), 16)
    return TB, num_tiles


@functools.partial(jax.jit, static_argnames=("condition_on_action",))
def beta_nn_forward(x, u, padded_params, condition_on_action=False):
    B = x.shape[0]
    TB, num_tiles = _batch_tiling(B)
    BP = TB * num_tiles

    if condition_on_action:
        w1x, w1u, b1, w2, b2, w3, b3 = padded_params
    else:
        w1x, b1, w2, b2, w3, b3 = padded_params
        w1u = None

    D_x, H1P = w1x.shape
    H2P = w2.shape[1]
    OP = w3.shape[1]

    x_in = x
    if BP != B:                                    # only glue op: rare row pad
        x_in = jnp.pad(x_in, ((0, BP - B), (0, 0)))

    batch_map = lambda i: (i, 0)                   # x / u / out move with grid
    const_map = lambda i: (0, 0)                   # weights / biases resident

    compiler_params = pltpu.CompilerParams(
        dimension_semantics=("parallel",),
        vmem_limit_bytes=32 * 1024 * 1024,         # headroom for TB up to 1024 on v5e
    )

    if condition_on_action:
        D_u = w1u.shape[0]
        u_in = u
        if BP != B:
            u_in = jnp.pad(u_in, ((0, BP - B), (0, 0)))
        out_p = pl.pallas_call(
            beta_nn_kernel_xu,
            out_shape=jax.ShapeDtypeStruct((BP, OP), jnp.float32),
            grid_spec=pltpu.PrefetchScalarGridSpec(
                num_scalar_prefetch=0,
                grid=(num_tiles,),
                in_specs=[
                    pl.BlockSpec((TB, D_x), batch_map),
                    pl.BlockSpec((TB, D_u), batch_map),
                    pl.BlockSpec((D_x, H1P), const_map),
                    pl.BlockSpec((D_u, H1P), const_map),
                    pl.BlockSpec((1, H1P), const_map),
                    pl.BlockSpec((H1P, H2P), const_map),
                    pl.BlockSpec((1, H2P), const_map),
                    pl.BlockSpec((H2P, OP), const_map),
                    pl.BlockSpec((1, OP), const_map),
                ],
                out_specs=pl.BlockSpec((TB, OP), batch_map),
            ),
            compiler_params=compiler_params,
        )(x_in, u_in, w1x, w1u, b1, w2, b2, w3, b3)
    else:
        out_p = pl.pallas_call(
            beta_nn_kernel_x,
            out_shape=jax.ShapeDtypeStruct((BP, OP), jnp.float32),
            grid_spec=pltpu.PrefetchScalarGridSpec(
                num_scalar_prefetch=0,
                grid=(num_tiles,),
                in_specs=[
                    pl.BlockSpec((TB, D_x), batch_map),
                    pl.BlockSpec((D_x, H1P), const_map),
                    pl.BlockSpec((1, H1P), const_map),
                    pl.BlockSpec((H1P, H2P), const_map),
                    pl.BlockSpec((1, H2P), const_map),
                    pl.BlockSpec((H2P, OP), const_map),
                    pl.BlockSpec((1, OP), const_map),
                ],
                out_specs=pl.BlockSpec((TB, OP), batch_map),
            ),
            compiler_params=compiler_params,
        )(x_in, w1x, b1, w2, b2, w3, b3)

    # Only column 0 / first B rows are real (Linear(300, 1) output).
    return out_p[:B, :1]


# ---------------------------------------------------------------------------
# Init + pure-JAX reference (for correctness checking).
# ---------------------------------------------------------------------------
def init_beta_nn_params(key, state_dim, action_dim, condition_on_action=False):
    """Deterministic init matching nn.Linear's default U(-1/sqrt(fan_in), +)."""
    input_dim = state_dim + action_dim if condition_on_action else state_dim
    dims = [(input_dim, 400), (400, 300), (300, 1)]
    params = []
    for fan_in, fan_out in dims:
        key, kw, kb = jax.random.split(key, 3)
        bound = 1.0 / math.sqrt(fan_in)
        w = jax.random.uniform(kw, (fan_in, fan_out), jnp.float32, -bound, bound)
        b = jax.random.uniform(kb, (fan_out,), jnp.float32, -bound, bound)
        params += [w, b]
    return tuple(params)


def beta_nn_reference(x, u, params, condition_on_action=False):
    inp = jnp.concatenate([x, u], axis=1) if condition_on_action else x
    w1, b1, w2, b2, w3, b3 = params
    h1 = jax.nn.relu(inp @ w1 + b1)
    h2 = jax.nn.relu(h1 @ w2 + b2)
    return jax.nn.sigmoid(h2 @ w3 + b3)


if __name__ == "__main__":
    key = jax.random.PRNGKey(0)
    state_dim, action_dim = 16, 4

    def run_case(batch, condition_on_action, case_id):
        kp, kx, ku = jax.random.split(jax.random.fold_in(key, case_id), 3)
        params = init_beta_nn_params(kp, state_dim, action_dim,
                                     condition_on_action)
        padded = pad_beta_nn_params(params, state_dim, condition_on_action)
        x = jax.random.normal(kx, (batch, state_dim), jnp.float32)
        u = jax.random.normal(ku, (batch, action_dim), jnp.float32)

        out = beta_nn_forward(x, u, padded,
                              condition_on_action=condition_on_action)
        out = jax.block_until_ready(out)

        ref = beta_nn_reference(x, u, params, condition_on_action)
        assert out.shape == (batch, 1), out.shape
        assert bool(jnp.all(out >= 0.0)) and bool(jnp.all(out <= 1.0))
        err = float(jnp.max(jnp.abs(out - ref)))
        # bf16 layers 1-2 with f32 accumulation; layer 3 + sigmoid in f32.
        assert err < 2e-2, (case_id, err)

    run_case(batch=2, condition_on_action=False, case_id=0)    # module default
    run_case(batch=2, condition_on_action=True, case_id=1)     # x/u split path
    run_case(batch=600, condition_on_action=False, case_id=2)  # 2-tile grid
    run_case(batch=2000, condition_on_action=True, case_id=3)  # TB near the 1024 cap

    print("KERNEL_OK")
</pallas_src>

<mosaic_0001>
module attributes {stable_mosaic.version = 11 : i64} {
  func.func @beta_nn_kernel_x(%arg0: i32, %arg1: memref<16x16xf32, #tpu.memory_space<vmem>>, %arg2: memref<16x512xbf16, #tpu.memory_space<vmem>>, %arg3: memref<1x512xf32, #tpu.memory_space<vmem>>, %arg4: memref<512x384xbf16, #tpu.memory_space<vmem>>, %arg5: memref<1x384xf32, #tpu.memory_space<vmem>>, %arg6: memref<384x8xf32, #tpu.memory_space<vmem>>, %arg7: memref<1x8xf32, #tpu.memory_space<vmem>>, %arg8: memref<16x8xf32, #tpu.memory_space<vmem>>) attributes {dimension_semantics = [#tpu.dimension_semantics<parallel>], iteration_bounds = array<i64: 1>, scalar_prefetch = 0 : i64, scratch_operands = 0 : i64, tpu.core_type = #tpu.core_type<tc>, window_params = [{transform_indices = @transform_0, window_bounds = array<i64: 16, 16>}, {pipeline_mode = #tpu.pipeline_mode<synchronous>, transform_indices = @transform_1, window_bounds = array<i64: 16, 512>}, {pipeline_mode = #tpu.pipeline_mode<synchronous>, transform_indices = @transform_2, window_bounds = array<i64: 1, 512>}, {pipeline_mode = #tpu.pipeline_mode<synchronous>, transform_indices = @transform_3, window_bounds = array<i64: 512, 384>}, {pipeline_mode = #tpu.pipeline_mode<synchronous>, transform_indices = @transform_4, window_bounds = array<i64: 1, 384>}, {pipeline_mode = #tpu.pipeline_mode<synchronous>, transform_indices = @transform_5, window_bounds = array<i64: 384, 8>}, {pipeline_mode = #tpu.pipeline_mode<synchronous>, transform_indices = @transform_6, window_bounds = array<i64: 1, 8>}, {transform_indices = @transform_7, window_bounds = array<i64: 16, 8>}]} {
    %c0 = arith.constant 0 : index
    %c0_0 = arith.constant 0 : index
    %0 = vector.load %arg1[%c0, %c0_0] : memref<16x16xf32, #tpu.memory_space<vmem>>, vector<16x16xf32>
    %1 = arith.truncf %0 : vector<16x16xf32> to vector<16x16xbf16>
    %c0_1 = arith.constant 0 : index
    %c0_2 = arith.constant 0 : index
    %2 = vector.load %arg2[%c0_1, %c0_2] : memref<16x512xbf16, #tpu.memory_space<vmem>>, vector<16x512xbf16>
    %cst = arith.constant dense<0.000000e+00> : vector<16x512xf32>
    %3 = tpu.matmul %1, %2, %cst {dimension_numbers = #tpu.dot_dimension_numbers<[1], [0], [0], [1], [0, 0, 1, 1], [], []>} : vector<16x16xbf16>, vector<16x512xbf16>, vector<16x512xf32> -> vector<16x512xf32>
    %c0_3 = arith.constant 0 : index
    %c0_4 = arith.constant 0 : index
    %4 = vector.load %arg3[%c0_3, %c0_4] : memref<1x512xf32, #tpu.memory_space<vmem>>, vector<1x512xf32>
    %5 = vector.broadcast %4 : vector<1x512xf32> to vector<16x512xf32>
    %6 = arith.addf %3, %5 : vector<16x512xf32>
    %cst_5 = arith.constant 0.000000e+00 : f32
    %7 = vector.broadcast %cst_5 : f32 to vector<16x512xf32>
    %8 = arith.maximumf %6, %7 : vector<16x512xf32>
    %9 = arith.truncf %8 : vector<16x512xf32> to vector<16x512xbf16>
    %c0_6 = arith.constant 0 : index
    %c0_7 = arith.constant 0 : index
    %10 = vector.load %arg4[%c0_6, %c0_7] : memref<512x384xbf16, #tpu.memory_space<vmem>>, vector<512x384xbf16>
    %cst_8 = arith.constant dense<0.000000e+00> : vector<16x384xf32>
    %11 = tpu.matmul %9, %10, %cst_8 {dimension_numbers = #tpu.dot_dimension_numbers<[1], [0], [0], [1], [0, 0, 1, 1], [], []>} : vector<16x512xbf16>, vector<512x384xbf16>, vector<16x384xf32> -> vector<16x384xf32>
    %c0_9 = arith.constant 0 : index
    %c0_10 = arith.constant 0 : index
    %12 = vector.load %arg5[%c0_9, %c0_10] : memref<1x384xf32, #tpu.memory_space<vmem>>, vector<1x384xf32>
    %13 = vector.broadcast %12 : vector<1x384xf32> to vector<16x384xf32>
    %14 = arith.addf %11, %13 : vector<16x384xf32>
    %cst_11 = arith.constant 0.000000e+00 : f32
    %15 = vector.broadcast %cst_11 : f32 to vector<16x384xf32>
    %16 = arith.maximumf %14, %15 : vector<16x384xf32>
    %c0_12 = arith.constant 0 : index
    %c0_13 = arith.constant 0 : index
    %17 = vector.load %arg6[%c0_12, %c0_13] : memref<384x8xf32, #tpu.memory_space<vmem>>, vector<384x8xf32>
    %cst_14 = arith.constant dense<0.000000e+00> : vector<16x8xf32>
    %18 = tpu.matmul %16, %17, %cst_14 {dimension_numbers = #tpu.dot_dimension_numbers<[1], [0], [0], [1], [0, 0, 1, 1], [], []>} : vector<16x384xf32>, vector<384x8xf32>, vector<16x8xf32> -> vector<16x8xf32>
    %c0_15 = arith.constant 0 : index
    %c0_16 = arith.constant 0 : index
    %19 = vector.load %arg7[%c0_15, %c0_16] : memref<1x8xf32, #tpu.memory_space<vmem>>, vector<1x8xf32>
    %20 = vector.broadcast %19 : vector<1x8xf32> to vector<16x8xf32>
    %21 = arith.addf %18, %20 : vector<16x8xf32>
    %cst_17 = arith.constant 0.000000e+00 : f32
    %22 = vector.broadcast %cst_17 : f32 to vector<16x8xf32>
    %23 = arith.subf %22, %21 : vector<16x8xf32>
    %24 = math.exp %23 : vector<16x8xf32>
    %cst_18 = arith.constant 1.000000e+00 : f32
    %25 = vector.broadcast %cst_18 : f32 to vector<16x8xf32>
    %26 = arith.addf %25, %24 : vector<16x8xf32>
    %cst_19 = arith.constant 1.000000e+00 : f32
    %27 = vector.broadcast %cst_19 : f32 to vector<16x8xf32>
    %28 = arith.divf %27, %26 : vector<16x8xf32>
    %c0_20 = arith.constant 0 : index
    %c0_21 = arith.constant 0 : index
    %29 = vector.load %arg8[%c0_20, %c0_21] : memref<16x8xf32, #tpu.memory_space<vmem>>, vector<16x8xf32>
    tpu.vector_store %arg8[%c0_20, %c0_21], %28 {strides = array<i32>} : memref<16x8xf32, #tpu.memory_space<vmem>>, vector<16x8xf32>,
    return
  }
  func.func @transform_0(%arg0: i32) -> (i32, i32) {
    %c0_i32 = arith.constant 0 : i32
    %c0_i32_0 = arith.constant 0 : i32
    return %arg0, %c0_i32 : i32, i32
  }
  func.func @transform_1(%arg0: i32) -> (i32, i32) {
    %c0_i32 = arith.constant 0 : i32
    %c0_i32_0 = arith.constant 0 : i32
    %c0_i32_1 = arith.constant 0 : i32
    return %c0_i32, %c0_i32_0 : i32, i32
  }
  func.func @transform_2(%arg0: i32) -> (i32, i32) {
    %c0_i32 = arith.constant 0 : i32
    %c0_i32_0 = arith.constant 0 : i32
    %c0_i32_1 = arith.constant 0 : i32
    return %c0_i32, %c0_i32_0 : i32, i32
  }
  func.func @transform_3(%arg0: i32) -> (i32, i32) {
    %c0_i32 = arith.constant 0 : i32
    %c0_i32_0 = arith.constant 0 : i32
    %c0_i32_1 = arith.constant 0 : i32
    return %c0_i32, %c0_i32_0 : i32, i32
  }
  func.func @transform_4(%arg0: i32) -> (i32, i32) {
    %c0_i32 = arith.constant 0 : i32
    %c0_i32_0 = arith.constant 0 : i32
    %c0_i32_1 = arith.constant 0 : i32
    return %c0_i32, %c0_i32_0 : i32, i32
  }
  func.func @transform_5(%arg0: i32) -> (i32, i32) {
    %c0_i32 = arith.constant 0 : i32
    %c0_i32_0 = arith.constant 0 : i32
    %c0_i32_1 = arith.constant 0 : i32
    return %c0_i32, %c0_i32_0 : i32, i32
  }
  func.func @transform_6(%arg0: i32) -> (i32, i32) {
    %c0_i32 = arith.constant 0 : i32
    %c0_i32_0 = arith.constant 0 : i32
    %c0_i32_1 = arith.constant 0 : i32
    return %c0_i32, %c0_i32_0 : i32, i32
  }
  func.func @transform_7(%arg0: i32) -> (i32, i32) {
    %c0_i32 = arith.constant 0 : i32
    %c0_i32_0 = arith.constant 0 : i32
    return %arg0, %c0_i32 : i32, i32
  }
}

</mosaic_0001>

<llo_original>
// kernel: beta_nn_forward.1
$region0: #{beta_nn_forward.1}
  #allocation0 [shape = 'u32[]', space=smem, size = 0x4, offset = 0x4, fixed_abs, tag = 'smem constant byte address 0x4 - core index']
  #allocation1 [shape = 'u32[144,128]{1,0:T(1,128)}', space=vmem, size = 0x12000, scoped, tag = 'internal scratch']
  %s0 = inlined_call_operand.vmem [shape: f32[16,16], index: 0, kind: input, shape index: {}]
  %s1 = inlined_call_operand.vmem [shape: bf16[16,512], index: 1, kind: input, shape index: {}]
  %s2 = inlined_call_operand.vmem [shape: f32[1,512], index: 2, kind: input, shape index: {}]
  %s3 = inlined_call_operand.hbm [shape: bf16[512,384], index: 3, kind: input, shape index: {}]
  %s4 = inlined_call_operand.vmem [shape: f32[1,384], index: 4, kind: input, shape index: {}]
  %s5 = inlined_call_operand.vmem [shape: f32[384,8], index: 5, kind: input, shape index: {}]
  %s6 = inlined_call_operand.vmem [shape: f32[1,8], index: 6, kind: input, shape index: {}]
  %s7 = inlined_call_operand.vmem [shape: f32[16,8], index: 7, kind: output, shape index: {}]
  %s8 = sld [smem:[#allocation0]]
  $region42: #{beta_nn_forward.1} parent=0
    _
  %s10 = ssub.s32 1, %s8
  %s11 = scalar_select 0, %s10, %s8
  $region1: #{beta_nn_forward.1} parent=0
    #allocation2 [shape = 'u8[393216]{0}', space=vmem, size = 0x60000, scoped, tag = 'input window, operand 3, single buffered']
    #allocation3 [shape = 's32[1]{0}', space=sflag, size = 0x4, scoped, tag = 'scoped memory for beta_nn_forward.1']
    %12 = vsyncpa [#allocation3], 0
    // Predicated region
    $region2: #{beta_nn_forward.1} parent=1 // pred_check
      _
    $region3: #{beta_nn_forward.1} parent=1 // pred_check_branch
      %14 = sbr.rel (0) target = $region5
    $region4: #{beta_nn_forward.1} parent=1 // pred_region
      _
    $region5: #{beta_nn_forward.1} parent=1 // pred_fallthru
      _
    // Predicated region
    $region6: #{beta_nn_forward.1} parent=1 // pred_check
      _
    $region7: #{beta_nn_forward.1} parent=1 // pred_check_branch
      %16 = sbr.rel (0) target = $region9
    $region8: #{beta_nn_forward.1} parent=1 // pred_region
      _
    $region9: #{beta_nn_forward.1} parent=1 // pred_fallthru
      _
    // Predicated region
    $region10: #{beta_nn_forward.1} parent=1 // pred_check
      _
    $region11: #{beta_nn_forward.1} parent=1 // pred_check_branch
      %18 = sbr.rel (0) target = $region13
    $region12: #{beta_nn_forward.1} parent=1 // pred_region
      _
    $region13: #{beta_nn_forward.1} parent=1 // pred_fallthru
      _
    // Predicated region
    $region14: #{beta_nn_forward.1} parent=1 // pred_check
      _
    $region15: #{beta_nn_forward.1} parent=1 // pred_check_branch
      %20 = sbr.rel (0) target = $region17
    $region16: #{beta_nn_forward.1} parent=1 // pred_region
      %s22 = ssub.s32 12288, 12288
      %23 = vsyncadd [#allocation3], %s22
      %s24 = sshll.u32 [#allocation2], 4
      %s25 = int_to_ptr.vmem [resolvable:$true] %s24
      %30 = dma.hbm_to_vmem [thread:$0]  %s3, 12288, %s25, [#allocation3], 192, 192, 12
    $region17: #{beta_nn_forward.1} parent=1 // pred_fallthru
      _
    // Predicated region
    $region18: #{beta_nn_forward.1} parent=1 // pred_check
      _
    $region19: #{beta_nn_forward.1} parent=1 // pred_check_branch
      %32 = sbr.rel (0) target = $region21
    $region20: #{beta_nn_forward.1} parent=1 // pred_region
      _
    $region21: #{beta_nn_forward.1} parent=1 // pred_fallthru
      _
    // Predicated region
    $region22: #{beta_nn_forward.1} parent=1 // pred_check
      _
    $region23: #{beta_nn_forward.1} parent=1 // pred_check_branch
      %34 = sbr.rel (0) target = $region25
    $region24: #{beta_nn_forward.1} parent=1 // pred_region
      _
    $region25: #{beta_nn_forward.1} parent=1 // pred_fallthru
      _
    // Predicated region
    $region26: #{beta_nn_forward.1} parent=1 // pred_check
      _
    $region27: #{beta_nn_forward.1} parent=1 // pred_check_branch
      %36 = sbr.rel (0) target = $region29
    $region28: #{beta_nn_forward.1} parent=1 // pred_region
      _
    $region29: #{beta_nn_forward.1} parent=1 // pred_fallthru
      _
    // Predicated region
    $region30: #{beta_nn_forward.1} parent=1 // pred_check
      _
    $region31: #{beta_nn_forward.1} parent=1 // pred_check_branch
      %38 = sbr.rel (0) target = $region33
    $region32: #{beta_nn_forward.1} parent=1 // pred_region
      %39 = dma.done [#allocation3], 12288
    $region33: #{beta_nn_forward.1} parent=1 // pred_fallthru
      _
    %v41 = vld [vmem:[%s0] sm:$0xff]
    %v42 = vld [vmem:[%s0 + $0x8] sm:$0xff]
    %v43 = vpack.c.bf16 %v42, %v41
    %v44 = vld [vmem:[%s1] sm:$0xff]
    %v45 = vld [vmem:[%s1 + $0x8] sm:$0xff]
    %v46 = vld [vmem:[%s1 + $0x10] sm:$0xff]
    %v47 = vld [vmem:[%s1 + $0x18] sm:$0xff]
    %v48 = vld [vmem:[%s2] sm:$0xf]
    %v50 = vlaneseq
    %v51 = vshrl.u32 %v50, 7
    %v52 = vsub.s32 0, %v51
    %v53 = vrot.slane %v48, %v52
    %v54 = vlaneseq
    %v55 = vshrl.u32 %v54, 7
    %v56 = vsub.s32 1, %v55
    %v57 = vrot.slane %v48, %v56
    %v58 = vlaneseq
    %v59 = vshrl.u32 %v58, 7
    %v60 = vsub.s32 2, %v59
    %v61 = vrot.slane %v48, %v60
    %v62 = vlaneseq
    %v63 = vshrl.u32 %v62, 7
    %v64 = vsub.s32 3, %v63
    %v65 = vrot.slane %v48, %v64
    %v74 = vunpack.c.l.b16 %v44
    %v75 = vunpack.c.h.b16 %v44
    %v76 = vunpack.c.l.b16 %v45
    %v77 = vunpack.c.h.b16 %v45
    %v78 = vunpack.c.l.b16 %v46
    %v79 = vunpack.c.h.b16 %v46
    %v80 = vunpack.c.l.b16 %v47
    %v81 = vunpack.c.h.b16 %v47
    %v82 = vpack.c.b16 %v78, %v74
    %v83 = vpack.c.b16 %v79, %v75
    %v84 = vpack.c.b16 %v80, %v76
    %v85 = vpack.c.b16 %v81, %v77
    %vm90 = vcmask 130048
    %v92 = vsel %vm90, %v43, 0
    %94 = vmatprep.subr.bf16.mxu0 0
    %95 = vmatpush1.bf16.msra.mxu0 0
    %96 = vmatprep.subr.bf16.mxu0 0
    %97 = vmatpush1.bf16.msra.mxu0 0
    %98 = vmatprep.subr.bf16.mxu0 0
    %99 = vmatpush1.bf16.msra.mxu0 0
    %100 = vmatprep.subr.bf16.mxu0 0
    %101 = vmatpush1.bf16.msra.mxu0 0
    %102 = vmatprep.subr.bf16.mxu0 0
    %103 = vmatpush1.bf16.msra.mxu0 0
    %104 = vmatprep.subr.bf16.mxu0 0
    %105 = vmatpush1.bf16.msra.mxu0 0
    %106 = vmatprep.subr.bf16.mxu0 0
    %107 = vmatpush1.bf16.msra.mxu0 0
    %108 = vmatprep.subr.bf16.mxu0 %v83
    %109 = vmatpush1.bf16.msra.mxu0 %v82
    %110 = vmatprep.subr.bf16.mxu0 0
    %111 = vmatpush2.bf16.msra.mxu0 0
    %112 = vmatprep.subr.bf16.mxu0 0
    %113 = vmatpush2.bf16.msra.mxu0 0
    %114 = vmatprep.subr.bf16.mxu0 0
    %115 = vmatpush2.bf16.msra.mxu0 0
    %116 = vmatprep.subr.bf16.mxu0 0
    %117 = vmatpush2.bf16.msra.mxu0 0
    %118 = vmatprep.subr.bf16.mxu0 0
    %119 = vmatpush2.bf16.msra.mxu0 0
    %120 = vmatprep.subr.bf16.mxu0 0
    %121 = vmatpush2.bf16.msra.mxu0 0
    %122 = vmatprep.subr.bf16.mxu0 0
    %123 = vmatpush2.bf16.msra.mxu0 0
    %124 = vmatprep.subr.bf16.mxu0 0
    %125 = vmatpush2.bf16.msra.mxu0 0
    %126 = vmatprep.mubr.bf16.mxu0 0
    %127 = vmatmul.mubr.bf16.gmra.mxu0 %v92
    %v128 = vpop.f32.mrf.mxu0
    %v129 = vadd.f32 %v53, %v128
    %v130 = vpop.f32.mrf.mxu0
    %v131 = vadd.f32 %v57, %v130
    %v132 = vpop.f32.mrf.mxu0
    %v133 = vadd.f32 %v53, %v132
    %v134 = vpop.f32.mrf.mxu0
    %v135 = vadd.f32 %v57, %v134
    %136 = vdwg.mxu0
    %137 = vmatprep.subr.bf16.mxu0 0
    %138 = vmatpush1.bf16.msra.mxu0 0
    %139 = vmatprep.subr.bf16.mxu0 0
    %140 = vmatpush1.bf16.msra.mxu0 0
    %141 = vmatprep.subr.bf16.mxu0 0
    %142 = vmatpush1.bf16.msra.mxu0 0
    %143 = vmatprep.subr.bf16.mxu0 0
    %144 = vmatpush1.bf16.msra.mxu0 0
    %145 = vmatprep.subr.bf16.mxu0 0
    %146 = vmatpush1.bf16.msra.mxu0 0
    %147 = vmatprep.subr.bf16.mxu0 0
    %148 = vmatpush1.bf16.msra.mxu0 0
    %149 = vmatprep.subr.bf16.mxu0 0
    %150 = vmatpush1.bf16.msra.mxu0 0
    %151 = vmatprep.subr.bf16.mxu0 %v85
    %152 = vmatpush1.bf16.msra.mxu0 %v84
    %153 = vmatprep.subr.bf16.mxu0 0
    %154 = vmatpush2.bf16.msra.mxu0 0
    %155 = vmatprep.subr.bf16.mxu0 0
    %156 = vmatpush2.bf16.msra.mxu0 0
    %157 = vmatprep.subr.bf16.mxu0 0
    %158 = vmatpush2.bf16.msra.mxu0 0
    %159 = vmatprep.subr.bf16.mxu0 0
    %160 = vmatpush2.bf16.msra.mxu0 0
    %161 = vmatprep.subr.bf16.mxu0 0
    %162 = vmatpush2.bf16.msra.mxu0 0
    %163 = vmatprep.subr.bf16.mxu0 0
    %164 = vmatpush2.bf16.msra.mxu0 0
    %165 = vmatprep.subr.bf16.mxu0 0
    %166 = vmatpush2.bf16.msra.mxu0 0
    %167 = vmatprep.subr.bf16.mxu0 0
    %168 = vmatpush2.bf16.msra.mxu0 0
    %169 = vmatprep.mubr.bf16.mxu0 0
    %170 = vmatmul.mubr.bf16.gmra.mxu0 %v92
    %v171 = vpop.f32.mrf.mxu0
    %v172 = vadd.f32 %v61, %v171
    %v173 = vpop.f32.mrf.mxu0
    %v174 = vadd.f32 %v65, %v173
    %v175 = vpop.f32.mrf.mxu0
    %v176 = vadd.f32 %v61, %v175
    %v177 = vpop.f32.mrf.mxu0
    %v178 = vadd.f32 %v65, %v177
    %179 = vdwg.mxu0
    %v180 = vmax.f32 %v129, 0.0
    %v181 = vmax.f32 %v131, 0.0
    %v182 = vmax.f32 %v172, 0.0
    %v183 = vmax.f32 %v174, 0.0
    %v184 = vmax.f32 %v133, 0.0
    %v185 = vmax.f32 %v135, 0.0
    %v186 = vmax.f32 %v176, 0.0
    %v187 = vmax.f32 %v178, 0.0
    %v188 = vpack.c.bf16 %v184, %v180
    %v189 = vpack.c.bf16 %v185, %v181
    %v190 = vpack.c.bf16 %v186, %v182
    %v191 = vpack.c.bf16 %v187, %v183
    %v192 = vld [vmem:[#allocation2] sm:$0xff]
    %v193 = vld [vmem:[#allocation2 + $0x8] sm:$0xf]
    %v194 = vld [vmem:[#allocation2 + $0xc] sm:$0xff]
    %v195 = vld [vmem:[#allocation2 + $0x14] sm:$0xf]
    %v196 = vld [vmem:[#allocation2 + $0x18] sm:$0xff]
    %v197 = vld [vmem:[#allocation2 + $0x20] sm:$0xf]
    %v198 = vld [vmem:[#allocation2 + $0x24] sm:$0xff]
    %v199 = vld [vmem:[#allocation2 + $0x2c] sm:$0xf]
    %v200 = vld [vmem:[#allocation2 + $0x30] sm:$0xff]
    %v201 = vld [vmem:[#allocation2 + $0x38] sm:$0xf]
    %v202 = vld [vmem:[#allocation2 + $0x3c] sm:$0xff]
    %v203 = vld [vmem:[#allocation2 + $0x44] sm:$0xf]
    %v204 = vld [vmem:[#allocation2 + $0x48] sm:$0xff]
    %v205 = vld [vmem:[#allocation2 + $0x50] sm:$0xf]
    %v206 = vld [vmem:[#allocation2 + $0x54] sm:$0xff]
    %v207 = vld [vmem:[#allocation2 + $0x5c] sm:$0xf]
    %v208 = vld [vmem:[#allocation2 + $0x60] sm:$0xff]
    %v209 = vld [vmem:[#allocation2 + $0x68] sm:$0xf]
    %v210 = vld [vmem:[#allocation2 + $0x6c] sm:$0xff]
    %v211 = vld [vmem:[#allocation2 + $0x74] sm:$0xf]
    %v212 = vld [vmem:[#allocation2 + $0x78] sm:$0xff]
    %v213 = vld [vmem:[#allocation2 + $0x80] sm:$0xf]
    %v214 = vld [vmem:[#allocation2 + $0x84] sm:$0xff]
    %v215 = vld [vmem:[#allocation2 + $0x8c] sm:$0xf]
    %v216 = vld [vmem:[#allocation2 + $0x90] sm:$0xff]
    %v217 = vld [vmem:[#allocation2 + $0x98] sm:$0xf]
    %v218 = vld [vmem:[#allocation2 + $0x9c] sm:$0xff]
    %v219 = vld [vmem:[#allocation2 + $0xa4] sm:$0xf]
    %v220 = vld [vmem:[#allocation2 + $0xa8] sm:$0xff]
    %v221 = vld [vmem:[#allocation2 + $0xb0] sm:$0xf]
    %v222 = vld [vmem:[#allocation2 + $0xb4] sm:$0xff]
    %v223 = vld [vmem:[#allocation2 + $0xbc] sm:$0xf]
    %v224 = vld [vmem:[#allocation2 + $0xc0] sm:$0xff]
    %v225 = vld [vmem:[#allocation2 + $0xc8] sm:$0xf]
    %v226 = vld [vmem:[#allocation2 + $0xcc] sm:$0xff]
    %v227 = vld [vmem:[#allocation2 + $0xd4] sm:$0xf]
    %v228 = vld [vmem:[#allocation2 + $0xd8] sm:$0xff]
    %v229 = vld [vmem:[#allocation2 + $0xe0] sm:$0xf]
    %v230 = vld [vmem:[#allocation2 + $0xe4] sm:$0xff]
    %v231 = vld [vmem:[#allocation2 + $0xec] sm:$0xf]
    %v232 = vld [vmem:[#allocation2 + $0xf0] sm:$0xff]
    %v233 = vld [vmem:[#allocation2 + $0xf8] sm:$0xf]
    %v234 = vld [vmem:[#allocation2 + $0xfc] sm:$0xff]
    %v235 = vld [vmem:[#allocation2 + $0x104] sm:$0xf]
    %v236 = vld [vmem:[#allocation2 + $0x108] sm:$0xff]
    %v237 = vld [vmem:[#allocation2 + $0x110] sm:$0xf]
    %v238 = vld [vmem:[#allocation2 + $0x114] sm:$0xff]
    %v239 = vld [vmem:[#allocation2 + $0x11c] sm:$0xf]
    %v240 = vld [vmem:[#allocation2 + $0x120] sm:$0xff]
    %v241 = vld [vmem:[#allocation2 + $0x128] sm:$0xf]
    %v242 = vld [vmem:[#allocation2 + $0x12c] sm:$0xff]
    %v243 = vld [vmem:[#allocation2 + $0x134] sm:$0xf]
    %v244 = vld [vmem:[#allocation2 + $0x138] sm:$0xff]
    %v245 = vld [vmem:[#allocation2 + $0x140] sm:$0xf]
    %v246 = vld [vmem:[#allocation2 + $0x144] sm:$0xff]
    %v247 = vld [vmem:[#allocation2 + $0x14c] sm:$0xf]
    %v248 = vld [vmem:[#allocation2 + $0x150] sm:$0xff]
    %v249 = vld [vmem:[#allocation2 + $0x158] sm:$0xf]
    %v250 = vld [vmem:[#allocation2 + $0x15c] sm:$0xff]
    %v251 = vld [vmem:[#allocation2 + $0x164] sm:$0xf]
    %v252 = vld [vmem:[#allocation2 + $0x168] sm:$0xff]
    %v253 = vld [vmem:[#allocation2 + $0x170] sm:$0xf]
    %v254 = vld [vmem:[#allocation2 + $0x174] sm:$0xff]
    %v255 = vld [vmem:[#allocation2 + $0x17c] sm:$0xf]
    %v256 = vld [vmem:[#allocation2 + $0x180] sm:$0xff]
    %v257 = vld [vmem:[#allocation2 + $0x188] sm:$0xf]
    %v258 = vld [vmem:[#allocation2 + $0x18c] sm:$0xff]
    %v259 = vld [vmem:[#allocation2 + $0x194] sm:$0xf]
    %v260 = vld [vmem:[#allocation2 + $0x198] sm:$0xff]
    %v261 = vld [vmem:[#allocation2 + $0x1a0] sm:$0xf]
    %v262 = vld [vmem:[#allocation2 + $0x1a4] sm:$0xff]
    %v263 = vld [vmem:[#allocation2 + $0x1ac] sm:$0xf]
    %v264 = vld [vmem:[#allocation2 + $0x1b0] sm:$0xff]
    %v265 = vld [vmem:[#allocation2 + $0x1b8] sm:$0xf]
    %v266 = vld [vmem:[#allocation2 + $0x1bc] sm:$0xff]
    %v267 = vld [vmem:[#allocation2 + $0x1c4] sm:$0xf]
    %v268 = vld [vmem:[#allocation2 + $0x1c8] sm:$0xff]
    %v269 = vld [vmem:[#allocation2 + $0x1d0] sm:$0xf]
    %v270 = vld [vmem:[#allocation2 + $0x1d4] sm:$0xff]
    %v271 = vld [vmem:[#allocation2 + $0x1dc] sm:$0xf]
    %v272 = vld [vmem:[#allocation2 + $0x1e0] sm:$0xff]
    %v273 = vld [vmem:[#allocation2 + $0x1e8] sm:$0xf]
    %v274 = vld [vmem:[#allocation2 + $0x1ec] sm:$0xff]
    %v275 = vld [vmem:[#allocation2 + $0x1f4] sm:$0xf]
    %v276 = vld [vmem:[#allocation2 + $0x1f8] sm:$0xff]
    %v277 = vld [vmem:[#allocation2 + $0x200] sm:$0xf]
    %v278 = vld [vmem:[#allocation2 + $0x204] sm:$0xff]
    %v279 = vld [vmem:[#allocation2 + $0x20c] sm:$0xf]
    %v280 = vld [vmem:[#allocation2 + $0x210] sm:$0xff]
    %v281 = vld [vmem:[#allocation2 + $0x218] sm:$0xf]
    %v282 = vld [vmem:[#allocation2 + $0x21c] sm:$0xff]
    %v283 = vld [vmem:[#allocation2 + $0x224] sm:$0xf]
    %v284 = vld [vmem:[#allocation2 + $0x228] sm:$0xff]
    %v285 = vld [vmem:[#allocation2 + $0x230] sm:$0xf]
    %v286 = vld [vmem:[#allocation2 + $0x234] sm:$0xff]
    %v287 = vld [vmem:[#allocation2 + $0x23c] sm:$0xf]
    %v288 = vld [vmem:[#allocation2 + $0x240] sm:$0xff]
    %v289 = vld [vmem:[#allocation2 + $0x248] sm:$0xf]
    %v290 = vld [vmem:[#allocation2 + $0x24c] sm:$0xff]
    %v291 = vld [vmem:[#allocation2 + $0x254] sm:$0xf]
    %v292 = vld [vmem:[#allocation2 + $0x258] sm:$0xff]
    %v293 = vld [vmem:[#allocation2 + $0x260] sm:$0xf]
    %v294 = vld [vmem:[#allocation2 + $0x264] sm:$0xff]
    %v295 = vld [vmem:[#allocation2 + $0x26c] sm:$0xf]
    %v296 = vld [vmem:[#allocation2 + $0x270] sm:$0xff]
    %v297 = vld [vmem:[#allocation2 + $0x278] sm:$0xf]
    %v298 = vld [vmem:[#allocation2 + $0x27c] sm:$0xff]
    %v299 = vld [vmem:[#allocation2 + $0x284] sm:$0xf]
    %v300 = vld [vmem:[#allocation2 + $0x288] sm:$0xff]
    %v301 = vld [vmem:[#allocation2 + $0x290] sm:$0xf]
    %v302 = vld [vmem:[#allocation2 + $0x294] sm:$0xff]
    %v303 = vld [vmem:[#allocation2 + $0x29c] sm:$0xf]
    %v304 = vld [vmem:[#allocation2 + $0x2a0] sm:$0xff]
    %v305 = vld [vmem:[#allocation2 + $0x2a8] sm:$0xf]
    %v306 = vld [vmem:[#allocation2 + $0x2ac] sm:$0xff]
    %v307 = vld [vmem:[#allocation2 + $0x2b4] sm:$0xf]
    %v308 = vld [vmem:[#allocation2 + $0x2b8] sm:$0xff]
    %v309 = vld [vmem:[#allocation2 + $0x2c0] sm:$0xf]
    %v310 = vld [vmem:[#allocation2 + $0x2c4] sm:$0xff]
    %v311 = vld [vmem:[#allocation2 + $0x2cc] sm:$0xf]
    %v312 = vld [vmem:[#allocation2 + $0x2d0] sm:$0xff]
    %v313 = vld [vmem:[#allocation2 + $0x2d8] sm:$0xf]
    %v314 = vld [vmem:[#allocation2 + $0x2dc] sm:$0xff]
    %v315 = vld [vmem:[#allocation2 + $0x2e4] sm:$0xf]
    %v316 = vld [vmem:[#allocation2 + $0x2e8] sm:$0xff]
    %v317 = vld [vmem:[#allocation2 + $0x2f0] sm:$0xf]
    %v318 = vld [vmem:[#allocation2 + $0x2f4] sm:$0xff]
    %v319 = vld [vmem:[#allocation2 + $0x2fc] sm:$0xf]
    %v320 = vld [vmem:[%s4] sm:$0x7]
    %v322 = vlaneseq
    %v323 = vshrl.u32 %v322, 7
    %v324 = vsub.s32 0, %v323
    %v325 = vrot.slane %v320, %v324
    %v326 = vlaneseq
    %v327 = vshrl.u32 %v326, 7
    %v328 = vsub.s32 1, %v327
    %v329 = vrot.slane %v320, %v328
    %v330 = vlaneseq
    %v331 = vshrl.u32 %v330, 7
    %v332 = vsub.s32 2, %v331
    %v333 = vrot.slane %v320, %v332
    %v465 = vunpack.c.l.b16 %v192
    %v466 = vunpack.c.h.b16 %v192
    %v467 = vunpack.c.l.b16 %v193
    %v468 = vunpack.c.l.b16 %v194
    %v469 = vunpack.c.h.b16 %v194
    %v470 = vunpack.c.l.b16 %v195
    %v471 = vunpack.c.l.b16 %v196
    %v472 = vunpack.c.h.b16 %v196
    %v473 = vunpack.c.l.b16 %v197
    %v474 = vunpack.c.l.b16 %v198
    %v475 = vunpack.c.h.b16 %v198
    %v476 = vunpack.c.l.b16 %v199
    %v477 = vunpack.c.l.b16 %v200
    %v478 = vunpack.c.h.b16 %v200
    %v479 = vunpack.c.l.b16 %v201
    %v480 = vunpack.c.l.b16 %v202
    %v481 = vunpack.c.h.b16 %v202
    %v482 = vunpack.c.l.b16 %v203
    %v483 = vunpack.c.l.b16 %v204
    %v484 = vunpack.c.h.b16 %v204
    %v485 = vunpack.c.l.b16 %v205
    %v486 = vunpack.c.l.b16 %v206
    %v487 = vunpack.c.h.b16 %v206
    %v488 = vunpack.c.l.b16 %v207
    %v489 = vunpack.c.l.b16 %v208
    %v490 = vunpack.c.h.b16 %v208
    %v491 = vunpack.c.l.b16 %v209
    %v492 = vunpack.c.l.b16 %v210
    %v493 = vunpack.c.h.b16 %v210
    %v494 = vunpack.c.l.b16 %v211
    %v495 = vunpack.c.l.b16 %v212
    %v496 = vunpack.c.h.b16 %v212
    %v497 = vunpack.c.l.b16 %v213
    %v498 = vunpack.c.l.b16 %v214
    %v499 = vunpack.c.h.b16 %v214
    %v500 = vunpack.c.l.b16 %v215
    %v501 = vunpack.c.l.b16 %v216
    %v502 = vunpack.c.h.b16 %v216
    %v503 = vunpack.c.l.b16 %v217
    %v504 = vunpack.c.l.b16 %v218
    %v505 = vunpack.c.h.b16 %v218
    %v506 = vunpack.c.l.b16 %v219
    %v507 = vunpack.c.l.b16 %v220
    %v508 = vunpack.c.h.b16 %v220
    %v509 = vunpack.c.l.b16 %v221
    %v510 = vunpack.c.l.b16 %v222
    %v511 = vunpack.c.h.b16 %v222
    %v512 = vunpack.c.l.b16 %v223
    %v513 = vunpack.c.l.b16 %v224
    %v514 = vunpack.c.h.b16 %v224
    %v515 = vunpack.c.l.b16 %v225
    %v516 = vunpack.c.l.b16 %v226
    %v517 = vunpack.c.h.b16 %v226
    %v518 = vunpack.c.l.b16 %v227
    %v519 = vunpack.c.l.b16 %v228
    %v520 = vunpack.c.h.b16 %v228
    %v521 = vunpack.c.l.b16 %v229
    %v522 = vunpack.c.l.b16 %v230
    %v523 = vunpack.c.h.b16 %v230
    %v524 = vunpack.c.l.b16 %v231
    %v525 = vunpack.c.l.b16 %v232
    %v526 = vunpack.c.h.b16 %v232
    %v527 = vunpack.c.l.b16 %v233
    %v528 = vunpack.c.l.b16 %v234
    %v529 = vunpack.c.h.b16 %v234
    %v530 = vunpack.c.l.b16 %v235
    %v531 = vunpack.c.l.b16 %v236
    %v532 = vunpack.c.h.b16 %v236
    %v533 = vunpack.c.l.b16 %v237
    %v534 = vunpack.c.l.b16 %v238
    %v535 = vunpack.c.h.b16 %v238
    %v536 = vunpack.c.l.b16 %v239
    %v537 = vunpack.c.l.b16 %v240
    %v538 = vunpack.c.h.b16 %v240
    %v539 = vunpack.c.l.b16 %v241
    %v540 = vunpack.c.l.b16 %v242
    %v541 = vunpack.c.h.b16 %v242
    %v542 = vunpack.c.l.b16 %v243
    %v543 = vunpack.c.l.b16 %v244
    %v544 = vunpack.c.h.b16 %v244
    %v545 = vunpack.c.l.b16 %v245
    %v546 = vunpack.c.l.b16 %v246
    %v547 = vunpack.c.h.b16 %v246
    %v548 = vunpack.c.l.b16 %v247
    %v549 = vunpack.c.l.b16 %v248
    %v550 = vunpack.c.h.b16 %v248
    %v551 = vunpack.c.l.b16 %v249
    %v552 = vunpack.c.l.b16 %v250
    %v553 = vunpack.c.h.b16 %v250
    %v554 = vunpack.c.l.b16 %v251
    %v555 = vunpack.c.l.b16 %v252
    %v556 = vunpack.c.h.b16 %v252
    %v557 = vunpack.c.l.b16 %v253
    %v558 = vunpack.c.l.b16 %v254
    %v559 = vunpack.c.h.b16 %v254
    %v560 = vunpack.c.l.b16 %v255
    %v561 = vunpack.c.l.b16 %v256
    %v562 = vunpack.c.h.b16 %v256
    %v563 = vunpack.c.l.b16 %v257
    %v564 = vunpack.c.l.b16 %v258
    %v565 = vunpack.c.h.b16 %v258
    %v566 = vunpack.c.l.b16 %v259
    %v567 = vunpack.c.l.b16 %v260
    %v568 = vunpack.c.h.b16 %v260
    %v569 = vunpack.c.l.b16 %v261
    %v570 = vunpack.c.l.b16 %v262
    %v571 = vunpack.c.h.b16 %v262
    %v572 = vunpack.c.l.b16 %v263
    %v573 = vunpack.c.l.b16 %v264
    %v574 = vunpack.c.h.b16 %v264
    %v575 = vunpack.c.l.b16 %v265
    %v576 = vunpack.c.l.b16 %v266
    %v577 = vunpack.c.h.b16 %v266
    %v578 = vunpack.c.l.b16 %v267
    %v579 = vunpack.c.l.b16 %v268
    %v580 = vunpack.c.h.b16 %v268
    %v581 = vunpack.c.l.b16 %v269
    %v582 = vunpack.c.l.b16 %v270
    %v583 = vunpack.c.h.b16 %v270
    %v584 = vunpack.c.l.b16 %v271
    %v585 = vunpack.c.l.b16 %v272
    %v586 = vunpack.c.h.b16 %v272
    %v587 = vunpack.c.l.b16 %v273
    %v588 = vunpack.c.l.b16 %v274
    %v589 = vunpack.c.h.b16 %v274
    %v590 = vunpack.c.l.b16 %v275
    %v591 = vunpack.c.l.b16 %v276
    %v592 = vunpack.c.h.b16 %v276
    %v593 = vunpack.c.l.b16 %v277
    %v594 = vunpack.c.l.b16 %v278
    %v595 = vunpack.c.h.b16 %v278
    %v596 = vunpack.c.l.b16 %v279
    %v597 = vunpack.c.l.b16 %v280
    %v598 = vunpack.c.h.b16 %v280
    %v599 = vunpack.c.l.b16 %v281
    %v600 = vunpack.c.l.b16 %v282
    %v601 = vunpack.c.h.b16 %v282
    %v602 = vunpack.c.l.b16 %v283
    %v603 = vunpack.c.l.b16 %v284
    %v604 = vunpack.c.h.b16 %v284
    %v605 = vunpack.c.l.b16 %v285
    %v606 = vunpack.c.l.b16 %v286
    %v607 = vunpack.c.h.b16 %v286
    %v608 = vunpack.c.l.b16 %v287
    %v609 = vunpack.c.l.b16 %v288
    %v610 = vunpack.c.h.b16 %v288
    %v611 = vunpack.c.l.b16 %v289
    %v612 = vunpack.c.l.b16 %v290
    %v613 = vunpack.c.h.b16 %v290
    %v614 = vunpack.c.l.b16 %v291
    %v615 = vunpack.c.l.b16 %v292
    %v616 = vunpack.c.h.b16 %v292
    %v617 = vunpack.c.l.b16 %v293
    %v618 = vunpack.c.l.b16 %v294
    %v619 = vunpack.c.h.b16 %v294
    %v620 = vunpack.c.l.b16 %v295
    %v621 = vunpack.c.l.b16 %v296
    %v622 = vunpack.c.h.b16 %v296
    %v623 = vunpack.c.l.b16 %v297
    %v624 = vunpack.c.l.b16 %v298
    %v625 = vunpack.c.h.b16 %v298
    %v626 = vunpack.c.l.b16 %v299
    %v627 = vunpack.c.l.b16 %v300
    %v628 = vunpack.c.h.b16 %v300
    %v629 = vunpack.c.l.b16 %v301
    %v630 = vunpack.c.l.b16 %v302
    %v631 = vunpack.c.h.b16 %v302
    %v632 = vunpack.c.l.b16 %v303
    %v633 = vunpack.c.l.b16 %v304
    %v634 = vunpack.c.h.b16 %v304
    %v635 = vunpack.c.l.b16 %v305
    %v636 = vunpack.c.l.b16 %v306
    %v637 = vunpack.c.h.b16 %v306
    %v638 = vunpack.c.l.b16 %v307
    %v639 = vunpack.c.l.b16 %v308
    %v640 = vunpack.c.h.b16 %v308
    %v641 = vunpack.c.l.b16 %v309
    %v642 = vunpack.c.l.b16 %v310
    %v643 = vunpack.c.h.b16 %v310
    %v644 = vunpack.c.l.b16 %v311
    %v645 = vunpack.c.l.b16 %v312
    %v646 = vunpack.c.h.b16 %v312
    %v647 = vunpack.c.l.b16 %v313
    %v648 = vunpack.c.l.b16 %v314
    %v649 = vunpack.c.h.b16 %v314
    %v650 = vunpack.c.l.b16 %v315
    %v651 = vunpack.c.l.b16 %v316
    %v652 = vunpack.c.h.b16 %v316
    %v653 = vunpack.c.l.b16 %v317
    %v654 = vunpack.c.l.b16 %v318
    %v655 = vunpack.c.h.b16 %v318
    %v656 = vunpack.c.l.b16 %v319
    %v657 = vpack.c.b16 %v468, %v465
    %v658 = vpack.c.b16 %v469, %v466
    %v659 = vpack.c.b16 %v470, %v467
    %v660 = vpack.c.b16 %v474, %v471
    %v661 = vpack.c.b16 %v475, %v472
    %v662 = vpack.c.b16 %v476, %v473
    %v663 = vpack.c.b16 %v480, %v477
    %v664 = vpack.c.b16 %v481, %v478
    %v665 = vpack.c.b16 %v482, %v479
    %v666 = vpack.c.b16 %v486, %v483
    %v667 = vpack.c.b16 %v487, %v484
    %v668 = vpack.c.b16 %v488, %v485
    %v669 = vpack.c.b16 %v492, %v489
    %v670 = vpack.c.b16 %v493, %v490
    %v671 = vpack.c.b16 %v494, %v491
    %v672 = vpack.c.b16 %v498, %v495
    %v673 = vpack.c.b16 %v499, %v496
    %v674 = vpack.c.b16 %v500, %v497
    %v675 = vpack.c.b16 %v504, %v501
    %v676 = vpack.c.b16 %v505, %v502
    %v677 = vpack.c.b16 %v506, %v503
    %v678 = vpack.c.b16 %v510, %v507
    %v679 = vpack.c.b16 %v511, %v508
    %v680 = vpack.c.b16 %v512, %v509
    %v681 = vpack.c.b16 %v516, %v513
    %v682 = vpack.c.b16 %v517, %v514
    %v683 = vpack.c.b16 %v518, %v515
    %v684 = vpack.c.b16 %v522, %v519
    %v685 = vpack.c.b16 %v523, %v520
    %v686 = vpack.c.b16 %v524, %v521
    %v687 = vpack.c.b16 %v528, %v525
    %v688 = vpack.c.b16 %v529, %v526
    %v689 = vpack.c.b16 %v530, %v527
    %v690 = vpack.c.b16 %v534, %v531
    %v691 = vpack.c.b16 %v535, %v532
    %v692 = vpack.c.b16 %v536, %v533
    %v693 = vpack.c.b16 %v540, %v537
    %v694 = vpack.c.b16 %v541, %v538
    %v695 = vpack.c.b16 %v542, %v539
    %v696 = vpack.c.b16 %v546, %v543
    %v697 = vpack.c.b16 %v547, %v544
    %v698 = vpack.c.b16 %v548, %v545
    %v699 = vpack.c.b16 %v552, %v549
    %v700 = vpack.c.b16 %v553, %v550
    %v701 = vpack.c.b16 %v554, %v551
    %v702 = vpack.c.b16 %v558, %v555
    %v703 = vpack.c.b16 %v559, %v556
    %v704 = vpack.c.b16 %v560, %v557
    %v705 = vpack.c.b16 %v564, %v561
    %v706 = vpack.c.b16 %v565, %v562
    %v707 = vpack.c.b16 %v566, %v563
    %v708 = vpack.c.b16 %v570, %v567
    %v709 = vpack.c.b16 %v571, %v568
    %v710 = vpack.c.b16 %v572, %v569
    %v711 = vpack.c.b16 %v576, %v573
    %v712 = vpack.c.b16 %v577, %v574
    %v713 = vpack.c.b16 %v578, %v575
    %v714 = vpack.c.b16 %v582, %v579
    %v715 = vpack.c.b16 %v583, %v580
    %v716 = vpack.c.b16 %v584, %v581
    %v717 = vpack.c.b16 %v588, %v585
    %v718 = vpack.c.b16 %v589, %v586
    %v719 = vpack.c.b16 %v590, %v587
    %v720 = vpack.c.b16 %v594, %v591
    %v721 = vpack.c.b16 %v595, %v592
    %v722 = vpack.c.b16 %v596, %v593
    %v723 = vpack.c.b16 %v600, %v597
    %v724 = vpack.c.b16 %v601, %v598
    %v725 = vpack.c.b16 %v602, %v599
    %v726 = vpack.c.b16 %v606, %v603
    %v727 = vpack.c.b16 %v607, %v604
    %v728 = vpack.c.b16 %v608, %v605
    %v729 = vpack.c.b16 %v612, %v609
    %v730 = vpack.c.b16 %v613, %v610
    %v731 = vpack.c.b16 %v614, %v611
    %v732 = vpack.c.b16 %v618, %v615
    %v733 = vpack.c.b16 %v619, %v616
    %v734 = vpack.c.b16 %v620, %v617
    %v735 = vpack.c.b16 %v624, %v621
    %v736 = vpack.c.b16 %v625, %v622
    %v737 = vpack.c.b16 %v626, %v623
    %v738 = vpack.c.b16 %v630, %v627
    %v739 = vpack.c.b16 %v631, %v628
    %v740 = vpack.c.b16 %v632, %v629
    %v741 = vpack.c.b16 %v636, %v633
    %v742 = vpack.c.b16 %v637, %v634
    %v743 = vpack.c.b16 %v638, %v635
    %v744 = vpack.c.b16 %v642, %v639
    %v745 = vpack.c.b16 %v643, %v640
    %v746 = vpack.c.b16 %v644, %v641
    %v747 = vpack.c.b16 %v648, %v645
    %v748 = vpack.c.b16 %v649, %v646
    %v749 = vpack.c.b16 %v650, %v647
    %v750 = vpack.c.b16 %v654, %v651
    %v751 = vpack.c.b16 %v655, %v652
    %v752 = vpack.c.b16 %v656, %v653
    %849 = vmatprep.subr.bf16.mxu0 %v679
    %850 = vmatpush1.bf16.msra.mxu0 %v678
    %851 = vmatprep.subr.bf16.mxu0 %v676
    %852 = vmatpush1.bf16.msra.mxu0 %v675
    %853 = vmatprep.subr.bf16.mxu0 %v673
    %854 = vmatpush1.bf16.msra.mxu0 %v672
    %855 = vmatprep.subr.bf16.mxu0 %v670
    %856 = vmatpush1.bf16.msra.mxu0 %v669
    %857 = vmatprep.subr.bf16.mxu0 %v667
    %858 = vmatpush1.bf16.msra.mxu0 %v666
    %859 = vmatprep.subr.bf16.mxu0 %v664
    %860 = vmatpush1.bf16.msra.mxu0 %v663
    %861 = vmatprep.subr.bf16.mxu0 %v661
    %862 = vmatpush1.bf16.msra.mxu0 %v660
    %863 = vmatprep.subr.bf16.mxu0 %v658
    %864 = vmatpush1.bf16.msra.mxu0 %v657
    %865 = vmatprep.subr.bf16.mxu0 %v703
    %866 = vmatpush2.bf16.msra.mxu0 %v702
    %867 = vmatprep.subr.bf16.mxu0 %v700
    %868 = vmatpush2.bf16.msra.mxu0 %v699
    %869 = vmatprep.subr.bf16.mxu0 %v697
    %870 = vmatpush2.bf16.msra.mxu0 %v696
    %871 = vmatprep.subr.bf16.mxu0 %v694
    %872 = vmatpush2.bf16.msra.mxu0 %v693
    %873 = vmatprep.subr.bf16.mxu0 %v691
    %874 = vmatpush2.bf16.msra.mxu0 %v690
    %875 = vmatprep.subr.bf16.mxu0 %v688
    %876 = vmatpush2.bf16.msra.mxu0 %v687
    %877 = vmatprep.subr.bf16.mxu0 %v685
    %878 = vmatpush2.bf16.msra.mxu0 %v684
    %879 = vmatprep.subr.bf16.mxu0 %v682
    %880 = vmatpush2.bf16.msra.mxu0 %v681
    %881 = vmatprep.mubr.bf16.mxu0 %v189
    %882 = vmatmul.mubr.bf16.gmra.mxu0 %v188
    %v883 = vpop.f32.mrf.mxu0
    %v884 = vadd.f32 %v325, %v883
    %v885 = vpop.f32.mrf.mxu0
    %v886 = vadd.f32 %v329, %v885
    %v887 = vpop.f32.mrf.mxu0
    %v888 = vadd.f32 %v325, %v887
    %v889 = vpop.f32.mrf.mxu0
    %v890 = vadd.f32 %v329, %v889
    %891 = vdwg.mxu0
    %892 = vmatprep.subr.bf16.mxu0 %v727
    %893 = vmatpush1.bf16.msra.mxu0 %v726
    %894 = vmatprep.subr.bf16.mxu0 %v724
    %895 = vmatpush1.bf16.msra.mxu0 %v723
    %896 = vmatprep.subr.bf16.mxu0 %v721
    %897 = vmatpush1.bf16.msra.mxu0 %v720
    %898 = vmatprep.subr.bf16.mxu0 %v718
    %899 = vmatpush1.bf16.msra.mxu0 %v717
    %900 = vmatprep.subr.bf16.mxu0 %v715
    %901 = vmatpush1.bf16.msra.mxu0 %v714
    %902 = vmatprep.subr.bf16.mxu0 %v712
    %903 = vmatpush1.bf16.msra.mxu0 %v711
    %904 = vmatprep.subr.bf16.mxu0 %v709
    %905 = vmatpush1.bf16.msra.mxu0 %v708
    %906 = vmatprep.subr.bf16.mxu0 %v706
    %907 = vmatpush1.bf16.msra.mxu0 %v705
    %908 = vmatprep.subr.bf16.mxu0 %v751
    %909 = vmatpush2.bf16.msra.mxu0 %v750
    %910 = vmatprep.subr.bf16.mxu0 %v748
    %911 = vmatpush2.bf16.msra.mxu0 %v747
    %912 = vmatprep.subr.bf16.mxu0 %v745
    %913 = vmatpush2.bf16.msra.mxu0 %v744
    %914 = vmatprep.subr.bf16.mxu0 %v742
    %915 = vmatpush2.bf16.msra.mxu0 %v741
    %916 = vmatprep.subr.bf16.mxu0 %v739
    %917 = vmatpush2.bf16.msra.mxu0 %v738
    %918 = vmatprep.subr.bf16.mxu0 %v736
    %919 = vmatpush2.bf16.msra.mxu0 %v735
    %920 = vmatprep.subr.bf16.mxu0 %v733
    %921 = vmatpush2.bf16.msra.mxu0 %v732
    %922 = vmatprep.subr.bf16.mxu0 %v730
    %923 = vmatpush2.bf16.msra.mxu0 %v729
    %924 = vmatprep.mubr.bf16.mxu0 %v191
    %925 = vmatmul.mubr.bf16.gmra.mxu0 %v190
    %v926 = vpop.f32.mrf.mxu0
    %v927 = vadd.f32 %v884, %v926
    %v928 = vpop.f32.mrf.mxu0
    %v929 = vadd.f32 %v886, %v928
    %v930 = vpop.f32.mrf.mxu0
    %v931 = vadd.f32 %v888, %v930
    %v932 = vpop.f32.mrf.mxu0
    %v933 = vadd.f32 %v890, %v932
    %934 = vdwg.mxu0
    %935 = vmatprep.subr.bf16.mxu0 0
    %936 = vmatpush1.bf16.msra.mxu0 %v680
    %937 = vmatprep.subr.bf16.mxu0 0
    %938 = vmatpush1.bf16.msra.mxu0 %v677
    %939 = vmatprep.subr.bf16.mxu0 0
    %940 = vmatpush1.bf16.msra.mxu0 %v674
    %941 = vmatprep.subr.bf16.mxu0 0
    %942 = vmatpush1.bf16.msra.mxu0 %v671
    %943 = vmatprep.subr.bf16.mxu0 0
    %944 = vmatpush1.bf16.msra.mxu0 %v668
    %945 = vmatprep.subr.bf16.mxu0 0
    %946 = vmatpush1.bf16.msra.mxu0 %v665
    %947 = vmatprep.subr.bf16.mxu0 0
    %948 = vmatpush1.bf16.msra.mxu0 %v662
    %949 = vmatprep.subr.bf16.mxu0 0
    %950 = vmatpush1.bf16.msra.mxu0 %v659
    %951 = vmatprep.subr.bf16.mxu0 0
    %952 = vmatpush2.bf16.msra.mxu0 %v704
    %953 = vmatprep.subr.bf16.mxu0 0
    %954 = vmatpush2.bf16.msra.mxu0 %v701
    %955 = vmatprep.subr.bf16.mxu0 0
    %956 = vmatpush2.bf16.msra.mxu0 %v698
    %957 = vmatprep.subr.bf16.mxu0 0
    %958 = vmatpush2.bf16.msra.mxu0 %v695
    %959 = vmatprep.subr.bf16.mxu0 0
    %960 = vmatpush2.bf16.msra.mxu0 %v692
    %961 = vmatprep.subr.bf16.mxu0 0
    %962 = vmatpush2.bf16.msra.mxu0 %v689
    %963 = vmatprep.subr.bf16.mxu0 0
    %964 = vmatpush2.bf16.msra.mxu0 %v686
    %965 = vmatprep.subr.bf16.mxu0 0
    %966 = vmatpush2.bf16.msra.mxu0 %v683
    %967 = vmatprep.mubr.bf16.mxu0 %v189
    %968 = vmatmul.mubr.bf16.gmra.mxu0 %v188
    %v969 = vpop.f32.mrf.mxu0
    %v970 = vadd.f32 %v333, %v969
    %v971 = vpop.f32.mrf.mxu0
    %v972 = vpop.f32.mrf.mxu0
    %v973 = vadd.f32 %v333, %v972
    %v974 = vpop.f32.mrf.mxu0
    %975 = vdwg.mxu0
    %976 = vmatprep.subr.bf16.mxu0 0
    %977 = vmatpush1.bf16.msra.mxu0 %v728
    %978 = vmatprep.subr.bf16.mxu0 0
    %979 = vmatpush1.bf16.msra.mxu0 %v725
    %980 = vmatprep.subr.bf16.mxu0 0
    %981 = vmatpush1.bf16.msra.mxu0 %v722
    %982 = vmatprep.subr.bf16.mxu0 0
    %983 = vmatpush1.bf16.msra.mxu0 %v719
    %984 = vmatprep.subr.bf16.mxu0 0
    %985 = vmatpush1.bf16.msra.mxu0 %v716
    %986 = vmatprep.subr.bf16.mxu0 0
    %987 = vmatpush1.bf16.msra.mxu0 %v713
    %988 = vmatprep.subr.bf16.mxu0 0
    %989 = vmatpush1.bf16.msra.mxu0 %v710
    %990 = vmatprep.subr.bf16.mxu0 0
    %991 = vmatpush1.bf16.msra.mxu0 %v707
    %992 = vmatprep.subr.bf16.mxu0 0
    %993 = vmatpush2.bf16.msra.mxu0 %v752
    %994 = vmatprep.subr.bf16.mxu0 0
    %995 = vmatpush2.bf16.msra.mxu0 %v749
    %996 = vmatprep.subr.bf16.mxu0 0
    %997 = vmatpush2.bf16.msra.mxu0 %v746
    %998 = vmatprep.subr.bf16.mxu0 0
    %999 = vmatpush2.bf16.msra.mxu0 %v743
    %1000 = vmatprep.subr.bf16.mxu0 0
    %1001 = vmatpush2.bf16.msra.mxu0 %v740
    %1002 = vmatprep.subr.bf16.mxu0 0
    %1003 = vmatpush2.bf16.msra.mxu0 %v737
    %1004 = vmatprep.subr.bf16.mxu0 0
    %1005 = vmatpush2.bf16.msra.mxu0 %v734
    %1006 = vmatprep.subr.bf16.mxu0 0
    %1007 = vmatpush2.bf16.msra.mxu0 %v731
    %1008 = vmatprep.mubr.bf16.mxu0 %v191
    %1009 = vmatmul.mubr.bf16.gmra.mxu0 %v190
    %v1010 = vpop.f32.mrf.mxu0
    %v1011 = vadd.f32 %v970, %v1010
    %v1012 = vpop.f32.mrf.mxu0
    %v1013 = vpop.f32.mrf.mxu0
    %v1014 = vadd.f32 %v973, %v1013
    %v1015 = vpop.f32.mrf.mxu0
    %1016 = vdwg.mxu0
    %v1017 = vmax.f32 %v927, 0.0
    %v1018 = vmax.f32 %v929, 0.0
    %v1019 = vmax.f32 %v1011, 0.0
    %v1020 = vmax.f32 %v931, 0.0
    %v1021 = vmax.f32 %v933, 0.0
    %v1022 = vmax.f32 %v1014, 0.0
    %v1023 = vld [vmem:[%s5] sm:$0xff]
    %v1024 = vld [vmem:[%s5 + $0x8] sm:$0xff]
    %v1025 = vld [vmem:[%s5 + $0x10] sm:$0xff]
    %v1026 = vld [vmem:[%s5 + $0x18] sm:$0xff]
    %v1027 = vld [vmem:[%s5 + $0x20] sm:$0xff]
    %v1028 = vld [vmem:[%s5 + $0x28] sm:$0xff]
    %v1029 = vld [vmem:[%s5 + $0x30] sm:$0xff]
    %v1030 = vld [vmem:[%s5 + $0x38] sm:$0xff]
    %v1031 = vld [vmem:[%s5 + $0x40] sm:$0xff]
    %v1032 = vld [vmem:[%s5 + $0x48] sm:$0xff]
    %v1033 = vld [vmem:[%s5 + $0x50] sm:$0xff]
    %v1034 = vld [vmem:[%s5 + $0x58] sm:$0xff]
    %v1035 = vld [vmem:[%s5 + $0x60] sm:$0xff]
    %v1036 = vld [vmem:[%s5 + $0x68] sm:$0xff]
    %v1037 = vld [vmem:[%s5 + $0x70] sm:$0xff]
    %v1038 = vld [vmem:[%s5 + $0x78] sm:$0xff]
    %v1039 = vld [vmem:[%s5 + $0x80] sm:$0xff]
    %v1040 = vld [vmem:[%s5 + $0x88] sm:$0xff]
    %v1041 = vld [vmem:[%s5 + $0x90] sm:$0xff]
    %v1042 = vld [vmem:[%s5 + $0x98] sm:$0xff]
    %v1043 = vld [vmem:[%s5 + $0xa0] sm:$0xff]
    %v1044 = vld [vmem:[%s5 + $0xa8] sm:$0xff]
    %v1045 = vld [vmem:[%s5 + $0xb0] sm:$0xff]
    %v1046 = vld [vmem:[%s5 + $0xb8] sm:$0xff]
    %v1047 = vld [vmem:[%s5 + $0xc0] sm:$0xff]
    %v1048 = vld [vmem:[%s5 + $0xc8] sm:$0xff]
    %v1049 = vld [vmem:[%s5 + $0xd0] sm:$0xff]
    %v1050 = vld [vmem:[%s5 + $0xd8] sm:$0xff]
    %v1051 = vld [vmem:[%s5 + $0xe0] sm:$0xff]
    %v1052 = vld [vmem:[%s5 + $0xe8] sm:$0xff]
    %v1053 = vld [vmem:[%s5 + $0xf0] sm:$0xff]
    %v1054 = vld [vmem:[%s5 + $0xf8] sm:$0xff]
    %v1055 = vld [vmem:[%s5 + $0x100] sm:$0xff]
    %v1056 = vld [vmem:[%s5 + $0x108] sm:$0xff]
    %v1057 = vld [vmem:[%s5 + $0x110] sm:$0xff]
    %v1058 = vld [vmem:[%s5 + $0x118] sm:$0xff]
    %v1059 = vld [vmem:[%s5 + $0x120] sm:$0xff]
    %v1060 = vld [vmem:[%s5 + $0x128] sm:$0xff]
    %v1061 = vld [vmem:[%s5 + $0x130] sm:$0xff]
    %v1062 = vld [vmem:[%s5 + $0x138] sm:$0xff]
    %v1063 = vld [vmem:[%s5 + $0x140] sm:$0xff]
    %v1064 = vld [vmem:[%s5 + $0x148] sm:$0xff]
    %v1065 = vld [vmem:[%s5 + $0x150] sm:$0xff]
    %v1066 = vld [vmem:[%s5 + $0x158] sm:$0xff]
    %v1067 = vld [vmem:[%s5 + $0x160] sm:$0xff]
    %v1068 = vld [vmem:[%s5 + $0x168] sm:$0xff]
    %v1069 = vld [vmem:[%s5 + $0x170] sm:$0xff]
    %v1070 = vld [vmem:[%s5 + $0x178] sm:$0xff]
    %v1071 = vld [vmem:[%s6] sm:$0x1]
    %v1073 = vlaneseq
    %v1074 = vshrl.u32 %v1073, 7
    %v1075 = vsub.s32 0, %v1074
    %v1076 = vrot.slane %v1071, %v1075
    %1078 = vmatprep.subr.mxu0 0.0
    %1079 = vmatpush1.msra.mxu0 %v1038
    %1080 = vmatprep.subr.mxu0 0.0
    %1081 = vmatpush1.msra.mxu0 %v1037
    %1082 = vmatprep.subr.mxu0 0.0
    %1083 = vmatpush1.msra.mxu0 %v1036
    %1084 = vmatprep.subr.mxu0 0.0
    %1085 = vmatpush1.msra.mxu0 %v1035
    %1086 = vmatprep.subr.mxu0 0.0
    %1087 = vmatpush1.msra.mxu0 %v1034
    %1088 = vmatprep.subr.mxu0 0.0
    %1089 = vmatpush1.msra.mxu0 %v1033
    %1090 = vmatprep.subr.mxu0 0.0
    %1091 = vmatpush1.msra.mxu0 %v1032
    %1092 = vmatprep.subr.mxu0 0.0
    %1093 = vmatpush1.msra.mxu0 %v1031
    %1094 = vmatprep.subr.mxu0 0.0
    %1095 = vmatpush1.msra.mxu0 %v1030
    %1096 = vmatprep.subr.mxu0 0.0
    %1097 = vmatpush1.msra.mxu0 %v1029
    %1098 = vmatprep.subr.mxu0 0.0
    %1099 = vmatpush1.msra.mxu0 %v1028
    %1100 = vmatprep.subr.mxu0 0.0
    %1101 = vmatpush1.msra.mxu0 %v1027
    %1102 = vmatprep.subr.mxu0 0.0
    %1103 = vmatpush1.msra.mxu0 %v1026
    %1104 = vmatprep.subr.mxu0 0.0
    %1105 = vmatpush1.msra.mxu0 %v1025
    %1106 = vmatprep.subr.mxu0 0.0
    %1107 = vmatpush1.msra.mxu0 %v1024
    %1108 = vmatprep.subr.mxu0 0.0
    %1109 = vmatpush1.msra.mxu0 %v1023
    %1110 = vmatprep.subr.mxu0 0.0
    %1111 = vmatpush2.msra.mxu0 %v1054
    %1112 = vmatprep.subr.mxu0 0.0
    %1113 = vmatpush2.msra.mxu0 %v1053
    %1114 = vmatprep.subr.mxu0 0.0
    %1115 = vmatpush2.msra.mxu0 %v1052
    %1116 = vmatprep.subr.mxu0 0.0
    %1117 = vmatpush2.msra.mxu0 %v1051
    %1118 = vmatprep.subr.mxu0 0.0
    %1119 = vmatpush2.msra.mxu0 %v1050
    %1120 = vmatprep.subr.mxu0 0.0
    %1121 = vmatpush2.msra.mxu0 %v1049
    %1122 = vmatprep.subr.mxu0 0.0
    %1123 = vmatpush2.msra.mxu0 %v1048
    %1124 = vmatprep.subr.mxu0 0.0
    %1125 = vmatpush2.msra.mxu0 %v1047
    %1126 = vmatprep.subr.mxu0 0.0
    %1127 = vmatpush2.msra.mxu0 %v1046
    %1128 = vmatprep.subr.mxu0 0.0
    %1129 = vmatpush2.msra.mxu0 %v1045
    %1130 = vmatprep.subr.mxu0 0.0
    %1131 = vmatpush2.msra.mxu0 %v1044
    %1132 = vmatprep.subr.mxu0 0.0
    %1133 = vmatpush2.msra.mxu0 %v1043
    %1134 = vmatprep.subr.mxu0 0.0
    %1135 = vmatpush2.msra.mxu0 %v1042
    %1136 = vmatprep.subr.mxu0 0.0
    %1137 = vmatpush2.msra.mxu0 %v1041
    %1138 = vmatprep.subr.mxu0 0.0
    %1139 = vmatpush2.msra.mxu0 %v1040
    %1140 = vmatprep.subr.mxu0 0.0
    %1141 = vmatpush2.msra.mxu0 %v1039
    %1142 = vmatprep.mubr.f32.mxu0 %v1018
    %1143 = vmatmul.mubr.f32.gmra.mxu0 %v1017
    %v1144 = vpop.f32.mrf.mxu0
    %v1145 = vadd.f32 %v1076, %v1144
    %v1146 = vpop.f32.mrf.mxu0
    %1147 = vmatprep.mubr.f32.mxu0 %v1021
    %1148 = vmatmul.mubr.f32.gmra.mxu0 %v1020
    %v1149 = vpop.f32.mrf.mxu0
    %v1150 = vadd.f32 %v1076, %v1149
    %v1151 = vpop.f32.mrf.mxu0
    %1152 = vdwg.mxu0
    %1153 = vmatprep.subr.mxu0 0.0
    %1154 = vmatpush1.msra.mxu0 %v1070
    %1155 = vmatprep.subr.mxu0 0.0
    %1156 = vmatpush1.msra.mxu0 %v1069
    %1157 = vmatprep.subr.mxu0 0.0
    %1158 = vmatpush1.msra.mxu0 %v1068
    %1159 = vmatprep.subr.mxu0 0.0
    %1160 = vmatpush1.msra.mxu0 %v1067
    %1161 = vmatprep.subr.mxu0 0.0
    %1162 = vmatpush1.msra.mxu0 %v1066
    %1163 = vmatprep.subr.mxu0 0.0
    %1164 = vmatpush1.msra.mxu0 %v1065
    %1165 = vmatprep.subr.mxu0 0.0
    %1166 = vmatpush1.msra.mxu0 %v1064
    %1167 = vmatprep.subr.mxu0 0.0
    %1168 = vmatpush1.msra.mxu0 %v1063
    %1169 = vmatprep.subr.mxu0 0.0
    %1170 = vmatpush1.msra.mxu0 %v1062
    %1171 = vmatprep.subr.mxu0 0.0
    %1172 = vmatpush1.msra.mxu0 %v1061
    %1173 = vmatprep.subr.mxu0 0.0
    %1174 = vmatpush1.msra.mxu0 %v1060
    %1175 = vmatprep.subr.mxu0 0.0
    %1176 = vmatpush1.msra.mxu0 %v1059
    %1177 = vmatprep.subr.mxu0 0.0
    %1178 = vmatpush1.msra.mxu0 %v1058
    %1179 = vmatprep.subr.mxu0 0.0
    %1180 = vmatpush1.msra.mxu0 %v1057
    %1181 = vmatprep.subr.mxu0 0.0
    %1182 = vmatpush1.msra.mxu0 %v1056
    %1183 = vmatprep.subr.mxu0 0.0
    %1184 = vmatpush1.msra.mxu0 %v1055
    %1185 = vmatprep.subr.mxu0 0.0
    %1186 = vmatpush2.msra.mxu0 0.0
    %1187 = vmatprep.subr.mxu0 0.0
    %1188 = vmatpush2.msra.mxu0 0.0
    %1189 = vmatprep.subr.mxu0 0.0
    %1190 = vmatpush2.msra.mxu0 0.0
    %1191 = vmatprep.subr.mxu0 0.0
    %1192 = vmatpush2.msra.mxu0 0.0
    %1193 = vmatprep.subr.mxu0 0.0
    %1194 = vmatpush2.msra.mxu0 0.0
    %1195 = vmatprep.subr.mxu0 0.0
    %1196 = vmatpush2.msra.mxu0 0.0
    %1197 = vmatprep.subr.mxu0 0.0
    %1198 = vmatpush2.msra.mxu0 0.0
    %1199 = vmatprep.subr.mxu0 0.0
    %1200 = vmatpush2.msra.mxu0 0.0
    %1201 = vmatprep.subr.mxu0 0.0
    %1202 = vmatpush2.msra.mxu0 0.0
    %1203 = vmatprep.subr.mxu0 0.0
    %1204 = vmatpush2.msra.mxu0 0.0
    %1205 = vmatprep.subr.mxu0 0.0
    %1206 = vmatpush2.msra.mxu0 0.0
    %1207 = vmatprep.subr.mxu0 0.0
    %1208 = vmatpush2.msra.mxu0 0.0
    %1209 = vmatprep.subr.mxu0 0.0
    %1210 = vmatpush2.msra.mxu0 0.0
    %1211 = vmatprep.subr.mxu0 0.0
    %1212 = vmatpush2.msra.mxu0 0.0
    %1213 = vmatprep.subr.mxu0 0.0
    %1214 = vmatpush2.msra.mxu0 0.0
    %1215 = vmatprep.subr.mxu0 0.0
    %1216 = vmatpush2.msra.mxu0 0.0
    %1217 = vmatprep.mubr.f32.mxu0 0.0
    %1218 = vmatmul.mubr.f32.gmra.mxu0 %v1019
    %v1219 = vpop.f32.mrf.mxu0
    %v1220 = vadd.f32 %v1145, %v1219
    %v1221 = vpop.f32.mrf.mxu0
    %1222 = vmatprep.mubr.f32.mxu0 0.0
    %1223 = vmatmul.mubr.f32.gmra.mxu0 %v1022
    %v1224 = vpop.f32.mrf.mxu0
    %v1225 = vadd.f32 %v1150, %v1224
    %v1226 = vpop.f32.mrf.mxu0
    %1227 = vdwg.mxu0
    %v1228 = vsub.f32 0.0, %v1220
    %v1229 = vsub.f32 0.0, %v1225
    %v1230 = vmul.f32 %v1228, 1.442695
    %v1231 = vpow.pop %v1230
    %v1232 = vmul.f32 %v1229, 1.442695
    %v1233 = vpow.pop %v1232
    %v1234 = vadd.f32 %v1231, 1.0
    %v1235 = vadd.f32 %v1233, 1.0
    %v1236 = vrcp.pop %v1234
    %v1237 = vmul.f32 1.0, %v1236
    %v1238 = vrcp.pop %v1235
    %v1239 = vmul.f32 1.0, %v1238
    %vm1240 = vcmask 64512
    %1241 = vst.msk [vmem:[%s7] sm:$0xff] %vm1240, %v1237
    %1242 = vst.msk [vmem:[%s7 + $0x8] sm:$0xff] %vm1240, %v1239
    // Predicated region
    $region34: #{beta_nn_forward.1} parent=1 // pred_check
      _
    $region35: #{beta_nn_forward.1} parent=1 // pred_check_branch
      %1244 = sbr.rel (0) target = $region37
    $region36: #{beta_nn_forward.1} parent=1 // pred_region
      _
    $region37: #{beta_nn_forward.1} parent=1 // pred_fallthru
      _
    // Predicated region
    $region38: #{beta_nn_forward.1} parent=1 // pred_check
      _
    $region39: #{beta_nn_forward.1} parent=1 // pred_check_branch
      %1246 = sbr.rel (0) target = $region41
    $region40: #{beta_nn_forward.1} parent=1 // pred_region
      _
    $region41: #{beta_nn_forward.1} parent=1 // pred_fallthru
      _
    %1247 = vsyncpa [#allocation3], 1

</llo_original>
